<compile_context>
chip_gen: v7x
topology: tpu7x:2x2x1
jax: 0.10.0
libtpu: 0.0.40
codegen_flags: <defaults>
</compile_context>

<pallas_src>
import jax
import jax.numpy as jnp
from jax.experimental import pallas as pl
from jax.experimental.pallas import tpu as pltpu

EPS = 1e-5


def _bn_relu(h, gamma, beta):
    # Training-mode BatchNorm1d (batch statistics over axis 0, biased variance) fused with ReLU.
    # NOTE: assumes every row of h is a real sample (no batch padding) -- stats divide by true B.
    mean = jnp.mean(h, axis=0, keepdims=True)
    c = h - mean
    var = jnp.mean(c * c, axis=0, keepdims=True)
    scale = gamma * jax.lax.rsqrt(var + EPS)          # single (1,H) vreg; rsqrt -> EUP slot
    return jnp.maximum(c * scale + beta, 0.0)


def simple_nn_kernel(x_ref,
                     w1_ref, g1_ref, be1_ref,
                     w2_ref, g2_ref, be2_ref,
                     w3_ref, b3_ref,
                     o_ref):
    x = x_ref[...]

    # fc1 (bias omitted: cancels under training-mode BN mean subtraction) -> bn1 -> relu
    h = jnp.dot(x, w1_ref[...], preferred_element_type=jnp.float32)
    h = _bn_relu(h, g1_ref[...], be1_ref[...])

    # fc2 (bias omitted) -> bn2 -> relu
    h = jnp.dot(h, w2_ref[...], preferred_element_type=jnp.float32)
    h = _bn_relu(h, g2_ref[...], be2_ref[...])

    # fc3 (real bias)
    o_ref[...] = jnp.dot(h, w3_ref[...], preferred_element_type=jnp.float32) + b3_ref[...]


def simple_nn_forward(x, params):
    """x: (B, input_size) f32. params: dict of (in, out) weights, (1, out) biases / BN gamma/beta."""
    B, in_f = x.shape
    hid = params["w1"].shape[1]
    ncls = params["w3"].shape[1]

    # Everything at true extents; only the operands the kernel needs (fc1/fc2 biases dropped).
    args = (x,
            params["w1"], params["g1"], params["be1"],
            params["w2"], params["g2"], params["be2"],
            params["w3"], params["b3"])

    out_shape = jax.ShapeDtypeStruct((B, ncls), jnp.float32)

    flops = 2 * B * (in_f * hid + hid * hid + hid * ncls)
    bytes_accessed = sum(a.size * a.dtype.itemsize for a in args) + B * ncls * 4
    cost = pl.CostEstimate(flops=flops, transcendentals=2 * hid, bytes_accessed=bytes_accessed)

    # Gridless call: full arrays resident in VMEM, no pipeline bookkeeping / double buffers.
    vmem_spec = pl.BlockSpec(memory_space=pltpu.MemorySpace.VMEM)
    return pl.pallas_call(
        simple_nn_kernel,
        out_shape=out_shape,
        in_specs=[vmem_spec] * len(args),
        out_specs=vmem_spec,
        cost_estimate=cost,
    )(*args)


def init_params(key, input_size, hidden_size, num_classes):
    """Deterministic synthetic parameters; Linear weights stored pre-transposed as (in, out)."""
    ks = jax.random.split(key, 6)

    def linear(kw, kb, fan_in, fan_out):
        bound = 1.0 / jnp.sqrt(fan_in)
        w = jax.random.uniform(kw, (fan_in, fan_out), jnp.float32, -bound, bound)
        b = jax.random.uniform(kb, (1, fan_out), jnp.float32, -bound, bound)
        return w, b

    w1, b1 = linear(ks[0], ks[1], input_size, hidden_size)
    w2, b2 = linear(ks[2], ks[3], hidden_size, hidden_size)
    w3, b3 = linear(ks[4], ks[5], hidden_size, num_classes)

    return dict(
        w1=w1, b1=b1,
        g1=jnp.ones((1, hidden_size), jnp.float32), be1=jnp.zeros((1, hidden_size), jnp.float32),
        w2=w2, b2=b2,
        g2=jnp.ones((1, hidden_size), jnp.float32), be2=jnp.zeros((1, hidden_size), jnp.float32),
        w3=w3, b3=b3,
    )


def reference_forward(x, p):
    """Pure-JAX reference with the *full* original semantics (including fc1/fc2 biases)."""
    def bn(h, g, b):
        mean = jnp.mean(h, axis=0, keepdims=True)
        var = jnp.mean((h - mean) ** 2, axis=0, keepdims=True)
        return (h - mean) * jax.lax.rsqrt(var + EPS) * g + b

    h = jnp.maximum(bn(x @ p["w1"] + p["b1"], p["g1"], p["be1"]), 0.0)
    h = jnp.maximum(bn(h @ p["w2"] + p["b2"], p["g2"], p["be2"]), 0.0)
    return h @ p["w3"] + p["b3"]


if __name__ == "__main__":
    batch, input_size, hidden_size, num_classes = 8, 16, 32, 4

    key = jax.random.PRNGKey(0)
    kx, kp = jax.random.split(key)
    x = jax.random.normal(kx, (batch, input_size), jnp.float32)
    params = init_params(kp, input_size, hidden_size, num_classes)

    fwd = jax.jit(simple_nn_forward)
    out = jax.block_until_ready(fwd(x, params))

    ref = reference_forward(x, params)
    assert out.shape == (batch, num_classes)
    assert jnp.allclose(out, ref, atol=1e-4, rtol=1e-4), "mismatch vs pure-JAX reference"

    print("KERNEL_OK")
</pallas_src>

<mosaic_0001>
module attributes {stable_mosaic.version = 11 : i64} {
  func.func @simple_nn_kernel(%arg0: memref<8x16xf32, #tpu.memory_space<vmem>>, %arg1: memref<16x32xf32, #tpu.memory_space<vmem>>, %arg2: memref<1x32xf32, #tpu.memory_space<vmem>>, %arg3: memref<1x32xf32, #tpu.memory_space<vmem>>, %arg4: memref<32x32xf32, #tpu.memory_space<vmem>>, %arg5: memref<1x32xf32, #tpu.memory_space<vmem>>, %arg6: memref<1x32xf32, #tpu.memory_space<vmem>>, %arg7: memref<32x4xf32, #tpu.memory_space<vmem>>, %arg8: memref<1x4xf32, #tpu.memory_space<vmem>>, %arg9: memref<8x4xf32, #tpu.memory_space<vmem>>) attributes {dimension_semantics = [], scalar_prefetch = 0 : i64, scratch_operands = 0 : i64, tpu.core_type = #tpu.core_type<tc>} {
    %c0 = arith.constant 0 : index
    %c0_0 = arith.constant 0 : index
    %0 = vector.load %arg0[%c0, %c0_0] : memref<8x16xf32, #tpu.memory_space<vmem>>, vector<8x16xf32>
    %c0_1 = arith.constant 0 : index
    %c0_2 = arith.constant 0 : index
    %1 = vector.load %arg1[%c0_1, %c0_2] : memref<16x32xf32, #tpu.memory_space<vmem>>, vector<16x32xf32>
    %cst = arith.constant dense<0.000000e+00> : vector<8x32xf32>
    %2 = tpu.matmul %0, %1, %cst {dimension_numbers = #tpu.dot_dimension_numbers<[1], [0], [0], [1], [0, 0, 1, 1], [], []>} : vector<8x16xf32>, vector<16x32xf32>, vector<8x32xf32> -> vector<8x32xf32>
    %c0_3 = arith.constant 0 : index
    %c0_4 = arith.constant 0 : index
    %3 = vector.load %arg2[%c0_3, %c0_4] : memref<1x32xf32, #tpu.memory_space<vmem>>, vector<1x32xf32>
    %c0_5 = arith.constant 0 : index
    %c0_6 = arith.constant 0 : index
    %4 = vector.load %arg3[%c0_5, %c0_6] : memref<1x32xf32, #tpu.memory_space<vmem>>, vector<1x32xf32>
    %cst_7 = arith.constant dense<0.000000e+00> : vector<32xf32>
    %5 = vector.multi_reduction <add>, %2, %cst_7 [0] : vector<8x32xf32> to vector<32xf32>
    %6 = vector.shape_cast %5 : vector<32xf32> to vector<1x32xf32>
    %cst_8 = arith.constant 8.000000e+00 : f32
    %7 = vector.broadcast %cst_8 : f32 to vector<1x32xf32>
    %8 = arith.divf %6, %7 : vector<1x32xf32>
    %9 = vector.broadcast %8 : vector<1x32xf32> to vector<8x32xf32>
    %10 = arith.subf %2, %9 : vector<8x32xf32>
    %11 = arith.mulf %10, %10 : vector<8x32xf32>
    %cst_9 = arith.constant dense<0.000000e+00> : vector<32xf32>
    %12 = vector.multi_reduction <add>, %11, %cst_9 [0] : vector<8x32xf32> to vector<32xf32>
    %13 = vector.shape_cast %12 : vector<32xf32> to vector<1x32xf32>
    %cst_10 = arith.constant 8.000000e+00 : f32
    %14 = vector.broadcast %cst_10 : f32 to vector<1x32xf32>
    %15 = arith.divf %13, %14 : vector<1x32xf32>
    %cst_11 = arith.constant 9.99999974E-6 : f32
    %16 = vector.broadcast %cst_11 : f32 to vector<1x32xf32>
    %17 = arith.addf %15, %16 : vector<1x32xf32>
    %18 = math.rsqrt %17 : vector<1x32xf32>
    %19 = arith.mulf %3, %18 : vector<1x32xf32>
    %20 = vector.broadcast %19 : vector<1x32xf32> to vector<8x32xf32>
    %21 = arith.mulf %10, %20 : vector<8x32xf32>
    %22 = vector.broadcast %4 : vector<1x32xf32> to vector<8x32xf32>
    %23 = arith.addf %21, %22 : vector<8x32xf32>
    %cst_12 = arith.constant 0.000000e+00 : f32
    %24 = vector.broadcast %cst_12 : f32 to vector<8x32xf32>
    %25 = arith.maximumf %23, %24 : vector<8x32xf32>
    %c0_13 = arith.constant 0 : index
    %c0_14 = arith.constant 0 : index
    %26 = vector.load %arg4[%c0_13, %c0_14] : memref<32x32xf32, #tpu.memory_space<vmem>>, vector<32x32xf32>
    %cst_15 = arith.constant dense<0.000000e+00> : vector<8x32xf32>
    %27 = tpu.matmul %25, %26, %cst_15 {dimension_numbers = #tpu.dot_dimension_numbers<[1], [0], [0], [1], [0, 0, 1, 1], [], []>} : vector<8x32xf32>, vector<32x32xf32>, vector<8x32xf32> -> vector<8x32xf32>
    %c0_16 = arith.constant 0 : index
    %c0_17 = arith.constant 0 : index
    %28 = vector.load %arg5[%c0_16, %c0_17] : memref<1x32xf32, #tpu.memory_space<vmem>>, vector<1x32xf32>
    %c0_18 = arith.constant 0 : index
    %c0_19 = arith.constant 0 : index
    %29 = vector.load %arg6[%c0_18, %c0_19] : memref<1x32xf32, #tpu.memory_space<vmem>>, vector<1x32xf32>
    %cst_20 = arith.constant dense<0.000000e+00> : vector<32xf32>
    %30 = vector.multi_reduction <add>, %27, %cst_20 [0] : vector<8x32xf32> to vector<32xf32>
    %31 = vector.shape_cast %30 : vector<32xf32> to vector<1x32xf32>
    %cst_21 = arith.constant 8.000000e+00 : f32
    %32 = vector.broadcast %cst_21 : f32 to vector<1x32xf32>
    %33 = arith.divf %31, %32 : vector<1x32xf32>
    %34 = vector.broadcast %33 : vector<1x32xf32> to vector<8x32xf32>
    %35 = arith.subf %27, %34 : vector<8x32xf32>
    %36 = arith.mulf %35, %35 : vector<8x32xf32>
    %cst_22 = arith.constant dense<0.000000e+00> : vector<32xf32>
    %37 = vector.multi_reduction <add>, %36, %cst_22 [0] : vector<8x32xf32> to vector<32xf32>
    %38 = vector.shape_cast %37 : vector<32xf32> to vector<1x32xf32>
    %cst_23 = arith.constant 8.000000e+00 : f32
    %39 = vector.broadcast %cst_23 : f32 to vector<1x32xf32>
    %40 = arith.divf %38, %39 : vector<1x32xf32>
    %cst_24 = arith.constant 9.99999974E-6 : f32
    %41 = vector.broadcast %cst_24 : f32 to vector<1x32xf32>
    %42 = arith.addf %40, %41 : vector<1x32xf32>
    %43 = math.rsqrt %42 : vector<1x32xf32>
    %44 = arith.mulf %28, %43 : vector<1x32xf32>
    %45 = vector.broadcast %44 : vector<1x32xf32> to vector<8x32xf32>
    %46 = arith.mulf %35, %45 : vector<8x32xf32>
    %47 = vector.broadcast %29 : vector<1x32xf32> to vector<8x32xf32>
    %48 = arith.addf %46, %47 : vector<8x32xf32>
    %cst_25 = arith.constant 0.000000e+00 : f32
    %49 = vector.broadcast %cst_25 : f32 to vector<8x32xf32>
    %50 = arith.maximumf %48, %49 : vector<8x32xf32>
    %c0_26 = arith.constant 0 : index
    %c0_27 = arith.constant 0 : index
    %51 = vector.load %arg7[%c0_26, %c0_27] : memref<32x4xf32, #tpu.memory_space<vmem>>, vector<32x4xf32>
    %cst_28 = arith.constant dense<0.000000e+00> : vector<8x4xf32>
    %52 = tpu.matmul %50, %51, %cst_28 {dimension_numbers = #tpu.dot_dimension_numbers<[1], [0], [0], [1], [0, 0, 1, 1], [], []>} : vector<8x32xf32>, vector<32x4xf32>, vector<8x4xf32> -> vector<8x4xf32>
    %c0_29 = arith.constant 0 : index
    %c0_30 = arith.constant 0 : index
    %53 = vector.load %arg8[%c0_29, %c0_30] : memref<1x4xf32, #tpu.memory_space<vmem>>, vector<1x4xf32>
    %54 = vector.broadcast %53 : vector<1x4xf32> to vector<8x4xf32>
    %55 = arith.addf %52, %54 : vector<8x4xf32>
    %c0_31 = arith.constant 0 : index
    %c0_32 = arith.constant 0 : index
    %56 = vector.load %arg9[%c0_31, %c0_32] : memref<8x4xf32, #tpu.memory_space<vmem>>, vector<8x4xf32>
    tpu.vector_store %arg9[%c0_31, %c0_32], %55 {strides = array<i32>} : memref<8x4xf32, #tpu.memory_space<vmem>>, vector<8x4xf32>,
    return
  }
}

</mosaic_0001>

<llo_original>
// kernel: simple_nn_forward.1
$region0: #{simple_nn_forward.1}
  #allocation0 [shape = 'u32[]', space=smem, size = 0x4, offset = 0x4, fixed_abs, tag = 'smem constant byte address 0x4 - core index']
  #allocation1 [shape = 'u32[144,128]{1,0:T(1,128)}', space=vmem, size = 0x12000, scoped, tag = 'internal scratch']
  %s0 = inlined_call_operand.vmem [shape: f32[8,16], index: 0, kind: input, shape index: {}]
  %s1 = inlined_call_operand.vmem [shape: f32[16,32], index: 1, kind: input, shape index: {}]
  %s2 = inlined_call_operand.vmem [shape: f32[1,32], index: 2, kind: input, shape index: {}]
  %s3 = inlined_call_operand.vmem [shape: f32[1,32], index: 3, kind: input, shape index: {}]
  %s4 = inlined_call_operand.vmem [shape: f32[32,32], index: 4, kind: input, shape index: {}]
  %s5 = inlined_call_operand.vmem [shape: f32[1,32], index: 5, kind: input, shape index: {}]
  %s6 = inlined_call_operand.vmem [shape: f32[1,32], index: 6, kind: input, shape index: {}]
  %s7 = inlined_call_operand.vmem [shape: f32[32,4], index: 7, kind: input, shape index: {}]
  %s8 = inlined_call_operand.vmem [shape: f32[1,4], index: 8, kind: input, shape index: {}]
  %s9 = inlined_call_operand.vmem [shape: f32[8,4], index: 9, kind: output, shape index: {}]
  %s10 = sld [smem:[#allocation0]]
  $region46: #{simple_nn_forward.1} parent=0
    _
  %s12 = ssub.s32 1, %s10
  %s13 = scalar_select 0, %s12, %s10
  // Predicated region
  $region2: #{simple_nn_forward.1} parent=0 // pred_check
    _
  $region3: #{simple_nn_forward.1} parent=0 // pred_check_branch
    %15 = sbr.rel (0) target = $region5
  $region4: #{simple_nn_forward.1} parent=0 // pred_region
    _
  $region5: #{simple_nn_forward.1} parent=0 // pred_fallthru
    _
  // Predicated region
  $region6: #{simple_nn_forward.1} parent=0 // pred_check
    _
  $region7: #{simple_nn_forward.1} parent=0 // pred_check_branch
    %17 = sbr.rel (0) target = $region9
  $region8: #{simple_nn_forward.1} parent=0 // pred_region
    _
  $region9: #{simple_nn_forward.1} parent=0 // pred_fallthru
    _
  // Predicated region
  $region10: #{simple_nn_forward.1} parent=0 // pred_check
    _
  $region11: #{simple_nn_forward.1} parent=0 // pred_check_branch
    %19 = sbr.rel (0) target = $region13
  $region12: #{simple_nn_forward.1} parent=0 // pred_region
    _
  $region13: #{simple_nn_forward.1} parent=0 // pred_fallthru
    _
  // Predicated region
  $region14: #{simple_nn_forward.1} parent=0 // pred_check
    _
  $region15: #{simple_nn_forward.1} parent=0 // pred_check_branch
    %21 = sbr.rel (0) target = $region17
  $region16: #{simple_nn_forward.1} parent=0 // pred_region
    _
  $region17: #{simple_nn_forward.1} parent=0 // pred_fallthru
    _
  // Predicated region
  $region18: #{simple_nn_forward.1} parent=0 // pred_check
    _
  $region19: #{simple_nn_forward.1} parent=0 // pred_check_branch
    %23 = sbr.rel (0) target = $region21
  $region20: #{simple_nn_forward.1} parent=0 // pred_region
    _
  $region21: #{simple_nn_forward.1} parent=0 // pred_fallthru
    _
  // Predicated region
  $region22: #{simple_nn_forward.1} parent=0 // pred_check
    _
  $region23: #{simple_nn_forward.1} parent=0 // pred_check_branch
    %25 = sbr.rel (0) target = $region25
  $region24: #{simple_nn_forward.1} parent=0 // pred_region
    _
  $region25: #{simple_nn_forward.1} parent=0 // pred_fallthru
    _
  // Predicated region
  $region26: #{simple_nn_forward.1} parent=0 // pred_check
    _
  $region27: #{simple_nn_forward.1} parent=0 // pred_check_branch
    %27 = sbr.rel (0) target = $region29
  $region28: #{simple_nn_forward.1} parent=0 // pred_region
    _
  $region29: #{simple_nn_forward.1} parent=0 // pred_fallthru
    _
  // Predicated region
  $region30: #{simple_nn_forward.1} parent=0 // pred_check
    _
  $region31: #{simple_nn_forward.1} parent=0 // pred_check_branch
    %29 = sbr.rel (0) target = $region33
  $region32: #{simple_nn_forward.1} parent=0 // pred_region
    _
  $region33: #{simple_nn_forward.1} parent=0 // pred_fallthru
    _
  // Predicated region
  $region34: #{simple_nn_forward.1} parent=0 // pred_check
    _
  $region35: #{simple_nn_forward.1} parent=0 // pred_check_branch
    %31 = sbr.rel (0) target = $region37
  $region36: #{simple_nn_forward.1} parent=0 // pred_region
    _
  $region37: #{simple_nn_forward.1} parent=0 // pred_fallthru
    _
  %v32 = vld [vmem:[%s0] sm:$0xff]
  %v33 = vld [vmem:[%s1] sm:$0xff]
  %v34 = vld [vmem:[%s1 + $0x8] sm:$0xff]
  %vm35 = vcmask 130048
  %v37 = vsel %vm35, %v32, 0
  %39 = vmatprep.subr.mxu0 0.0
  %40 = vmatpush1.msra.mxu0 %v33
  %41 = vmatprep.subr.mxu0 0.0
  %42 = vmatpush1.msra.mxu0 %v34
  %43 = vmatprep.subr.mxu0 0.0
  %44 = vmatpush1.msra.mxu0 0.0
  %45 = vmatprep.subr.mxu0 0.0
  %46 = vmatpush1.msra.mxu0 0.0
  %47 = vmatprep.subr.mxu0 0.0
  %48 = vmatpush1.msra.mxu0 0.0
  %49 = vmatprep.subr.mxu0 0.0
  %50 = vmatpush1.msra.mxu0 0.0
  %51 = vmatprep.subr.mxu0 0.0
  %52 = vmatpush1.msra.mxu0 0.0
  %53 = vmatprep.subr.mxu0 0.0
  %54 = vmatpush1.msra.mxu0 0.0
  %55 = vmatprep.subr.mxu0 0.0
  %56 = vmatpush1.msra.mxu0 0.0
  %57 = vmatprep.subr.mxu0 0.0
  %58 = vmatpush1.msra.mxu0 0.0
  %59 = vmatprep.subr.mxu0 0.0
  %60 = vmatpush1.msra.mxu0 0.0
  %61 = vmatprep.subr.mxu0 0.0
  %62 = vmatpush1.msra.mxu0 0.0
  %63 = vmatprep.subr.mxu0 0.0
  %64 = vmatpush1.msra.mxu0 0.0
  %65 = vmatprep.subr.mxu0 0.0
  %66 = vmatpush1.msra.mxu0 0.0
  %67 = vmatprep.subr.mxu0 0.0
  %68 = vmatpush1.msra.mxu0 0.0
  %69 = vmatprep.subr.mxu0 0.0
  %70 = vmatpush1.msra.mxu0 0.0
  %71 = vmatprep.subr.mxu0 0.0
  %72 = vmatpush1.msra.mxu0 0.0
  %73 = vmatprep.subr.mxu0 0.0
  %74 = vmatpush1.msra.mxu0 0.0
  %75 = vmatprep.subr.mxu0 0.0
  %76 = vmatpush1.msra.mxu0 0.0
  %77 = vmatprep.subr.mxu0 0.0
  %78 = vmatpush1.msra.mxu0 0.0
  %79 = vmatprep.subr.mxu0 0.0
  %80 = vmatpush1.msra.mxu0 0.0
  %81 = vmatprep.subr.mxu0 0.0
  %82 = vmatpush1.msra.mxu0 0.0
  %83 = vmatprep.subr.mxu0 0.0
  %84 = vmatpush1.msra.mxu0 0.0
  %85 = vmatprep.subr.mxu0 0.0
  %86 = vmatpush1.msra.mxu0 0.0
  %87 = vmatprep.subr.mxu0 0.0
  %88 = vmatpush1.msra.mxu0 0.0
  %89 = vmatprep.subr.mxu0 0.0
  %90 = vmatpush1.msra.mxu0 0.0
  %91 = vmatprep.subr.mxu0 0.0
  %92 = vmatpush1.msra.mxu0 0.0
  %93 = vmatprep.subr.mxu0 0.0
  %94 = vmatpush1.msra.mxu0 0.0
  %95 = vmatprep.subr.mxu0 0.0
  %96 = vmatpush1.msra.mxu0 0.0
  %97 = vmatprep.subr.mxu0 0.0
  %98 = vmatpush1.msra.mxu0 0.0
  %99 = vmatprep.subr.mxu0 0.0
  %100 = vmatpush1.msra.mxu0 0.0
  %101 = vmatprep.subr.mxu0 0.0
  %102 = vmatpush1.msra.mxu0 0.0
  %103 = vmatprep.mubr.f32.mxu0 0.0
  %104 = vmatmul.mubr.f32.gmra.mrb[0].mxu0 %v37
  %v105 = vpop.f32.mrb[0].mxu0
  %v106 = vadd.f32 0.0, %v105
  %v107 = vpop.f32.mrb[0].mxu0
  %108 = vdwg.mxu0
  %v109 = vld [vmem:[%s2] sm:$0x1]
  %v110 = vld [vmem:[%s3] sm:$0x1]
  %vm111 = vcmask 261120
  %v112 = vsel %vm111, %v106, 0.0
  %v113 = vrot.slane %v112, 4
  %v114 = vadd.f32 %v112, %v113
  %v115 = vrot.slane %v114, 2
  %v116 = vadd.f32 %v114, %v115
  %v117 = vrot.slane %v116, 1
  %v118 = vadd.f32 %v116, %v117
  %v119 = vrcp.pop 8.0
  %v120 = vmul.f32 %v118, %v119
  %v121 = vsub.f32 %v106, %v120
  %v122 = vmul.f32 %v121, %v121
  %v123 = vsel %vm111, %v122, 0.0
  %v124 = vrot.slane %v123, 4
  %v125 = vadd.f32 %v123, %v124
  %v126 = vrot.slane %v125, 2
  %v127 = vadd.f32 %v125, %v126
  %v128 = vrot.slane %v127, 1
  %v129 = vadd.f32 %v127, %v128
  %v130 = vmul.f32 %v129, %v119
  %v131 = vadd.f32 %v130, 1e-05
  %v132 = vrsqrt.pop %v131
  %v133 = vmul.f32 %v109, %v132
  %v135 = vlaneseq
  %v136 = vshrl.u32 %v135, 7
  %v137 = vsub.s32 0, %v136
  %v138 = vrot.slane %v133, %v137
  %v140 = vmul.f32 %v121, %v138
  %v142 = vlaneseq
  %v143 = vshrl.u32 %v142, 7
  %v144 = vsub.s32 0, %v143
  %v145 = vrot.slane %v110, %v144
  %v147 = vadd.f32 %v140, %v145
  %v148 = vmax.f32 %v147, 0.0
  %v149 = vld [vmem:[%s4] sm:$0xff]
  %v150 = vld [vmem:[%s4 + $0x8] sm:$0xff]
  %v151 = vld [vmem:[%s4 + $0x10] sm:$0xff]
  %v152 = vld [vmem:[%s4 + $0x18] sm:$0xff]
  %v154 = vsel %vm111, %v148, 0
  %156 = vmatprep.subr.mxu0 0.0
  %157 = vmatpush1.msra.mxu0 %v149
  %158 = vmatprep.subr.mxu0 0.0
  %159 = vmatpush1.msra.mxu0 %v150
  %160 = vmatprep.subr.mxu0 0.0
  %161 = vmatpush1.msra.mxu0 %v151
  %162 = vmatprep.subr.mxu0 0.0
  %163 = vmatpush1.msra.mxu0 %v152
  %164 = vmatprep.subr.mxu0 0.0
  %165 = vmatpush1.msra.mxu0 0.0
  %166 = vmatprep.subr.mxu0 0.0
  %167 = vmatpush1.msra.mxu0 0.0
  %168 = vmatprep.subr.mxu0 0.0
  %169 = vmatpush1.msra.mxu0 0.0
  %170 = vmatprep.subr.mxu0 0.0
  %171 = vmatpush1.msra.mxu0 0.0
  %172 = vmatprep.subr.mxu0 0.0
  %173 = vmatpush1.msra.mxu0 0.0
  %174 = vmatprep.subr.mxu0 0.0
  %175 = vmatpush1.msra.mxu0 0.0
  %176 = vmatprep.subr.mxu0 0.0
  %177 = vmatpush1.msra.mxu0 0.0
  %178 = vmatprep.subr.mxu0 0.0
  %179 = vmatpush1.msra.mxu0 0.0
  %180 = vmatprep.subr.mxu0 0.0
  %181 = vmatpush1.msra.mxu0 0.0
  %182 = vmatprep.subr.mxu0 0.0
  %183 = vmatpush1.msra.mxu0 0.0
  %184 = vmatprep.subr.mxu0 0.0
  %185 = vmatpush1.msra.mxu0 0.0
  %186 = vmatprep.subr.mxu0 0.0
  %187 = vmatpush1.msra.mxu0 0.0
  %188 = vmatprep.subr.mxu0 0.0
  %189 = vmatpush1.msra.mxu0 0.0
  %190 = vmatprep.subr.mxu0 0.0
  %191 = vmatpush1.msra.mxu0 0.0
  %192 = vmatprep.subr.mxu0 0.0
  %193 = vmatpush1.msra.mxu0 0.0
  %194 = vmatprep.subr.mxu0 0.0
  %195 = vmatpush1.msra.mxu0 0.0
  %196 = vmatprep.subr.mxu0 0.0
  %197 = vmatpush1.msra.mxu0 0.0
  %198 = vmatprep.subr.mxu0 0.0
  %199 = vmatpush1.msra.mxu0 0.0
  %200 = vmatprep.subr.mxu0 0.0
  %201 = vmatpush1.msra.mxu0 0.0
  %202 = vmatprep.subr.mxu0 0.0
  %203 = vmatpush1.msra.mxu0 0.0
  %204 = vmatprep.subr.mxu0 0.0
  %205 = vmatpush1.msra.mxu0 0.0
  %206 = vmatprep.subr.mxu0 0.0
  %207 = vmatpush1.msra.mxu0 0.0
  %208 = vmatprep.subr.mxu0 0.0
  %209 = vmatpush1.msra.mxu0 0.0
  %210 = vmatprep.subr.mxu0 0.0
  %211 = vmatpush1.msra.mxu0 0.0
  %212 = vmatprep.subr.mxu0 0.0
  %213 = vmatpush1.msra.mxu0 0.0
  %214 = vmatprep.subr.mxu0 0.0
  %215 = vmatpush1.msra.mxu0 0.0
  %216 = vmatprep.subr.mxu0 0.0
  %217 = vmatpush1.msra.mxu0 0.0
  %218 = vmatprep.subr.mxu0 0.0
  %219 = vmatpush1.msra.mxu0 0.0
  %220 = vmatprep.mubr.f32.mxu0 0.0
  %221 = vmatmul.mubr.f32.gmra.mrb[0].mxu0 %v154
  %v222 = vpop.f32.mrb[0].mxu0
  %v223 = vadd.f32 0.0, %v222
  %v224 = vpop.f32.mrb[0].mxu0
  %225 = vdwg.mxu0
  %v226 = vld [vmem:[%s5] sm:$0x1]
  %v227 = vld [vmem:[%s6] sm:$0x1]
  %v228 = vsel %vm111, %v223, 0.0
  %v229 = vrot.slane %v228, 4
  %v230 = vadd.f32 %v228, %v229
  %v231 = vrot.slane %v230, 2
  %v232 = vadd.f32 %v230, %v231
  %v233 = vrot.slane %v232, 1
  %v234 = vadd.f32 %v232, %v233
  %v235 = vmul.f32 %v234, %v119
  %v236 = vsub.f32 %v223, %v235
  %v237 = vmul.f32 %v236, %v236
  %v238 = vsel %vm111, %v237, 0.0
  %v239 = vrot.slane %v238, 4
  %v240 = vadd.f32 %v238, %v239
  %v241 = vrot.slane %v240, 2
  %v242 = vadd.f32 %v240, %v241
  %v243 = vrot.slane %v242, 1
  %v244 = vadd.f32 %v242, %v243
  %v245 = vmul.f32 %v244, %v119
  %v246 = vadd.f32 %v245, 1e-05
  %v247 = vrsqrt.pop %v246
  %v248 = vmul.f32 %v226, %v247
  %v250 = vlaneseq
  %v251 = vshrl.u32 %v250, 7
  %v252 = vsub.s32 0, %v251
  %v253 = vrot.slane %v248, %v252
  %v255 = vmul.f32 %v236, %v253
  %v257 = vlaneseq
  %v258 = vshrl.u32 %v257, 7
  %v259 = vsub.s32 0, %v258
  %v260 = vrot.slane %v227, %v259
  %v262 = vadd.f32 %v255, %v260
  %v263 = vmax.f32 %v262, 0.0
  %v264 = vld [vmem:[%s7] sm:$0xff]
  %v265 = vld [vmem:[%s7 + $0x8] sm:$0xff]
  %v266 = vld [vmem:[%s7 + $0x10] sm:$0xff]
  %v267 = vld [vmem:[%s7 + $0x18] sm:$0xff]
  %v268 = vld [vmem:[%s8] sm:$0x1]
  %v270 = vlaneseq
  %v271 = vshrl.u32 %v270, 7
  %v272 = vsub.s32 0, %v271
  %v273 = vrot.slane %v268, %v272
  %v276 = vsel %vm111, %v263, 0
  %278 = vmatprep.subr.mxu0 0.0
  %279 = vmatpush1.msra.mxu0 %v264
  %280 = vmatprep.subr.mxu0 0.0
  %281 = vmatpush1.msra.mxu0 %v265
  %282 = vmatprep.subr.mxu0 0.0
  %283 = vmatpush1.msra.mxu0 %v266
  %284 = vmatprep.subr.mxu0 0.0
  %285 = vmatpush1.msra.mxu0 %v267
  %286 = vmatprep.subr.mxu0 0.0
  %287 = vmatpush1.msra.mxu0 0.0
  %288 = vmatprep.subr.mxu0 0.0
  %289 = vmatpush1.msra.mxu0 0.0
  %290 = vmatprep.subr.mxu0 0.0
  %291 = vmatpush1.msra.mxu0 0.0
  %292 = vmatprep.subr.mxu0 0.0
  %293 = vmatpush1.msra.mxu0 0.0
  %294 = vmatprep.subr.mxu0 0.0
  %295 = vmatpush1.msra.mxu0 0.0
  %296 = vmatprep.subr.mxu0 0.0
  %297 = vmatpush1.msra.mxu0 0.0
  %298 = vmatprep.subr.mxu0 0.0
  %299 = vmatpush1.msra.mxu0 0.0
  %300 = vmatprep.subr.mxu0 0.0
  %301 = vmatpush1.msra.mxu0 0.0
  %302 = vmatprep.subr.mxu0 0.0
  %303 = vmatpush1.msra.mxu0 0.0
  %304 = vmatprep.subr.mxu0 0.0
  %305 = vmatpush1.msra.mxu0 0.0
  %306 = vmatprep.subr.mxu0 0.0
  %307 = vmatpush1.msra.mxu0 0.0
  %308 = vmatprep.subr.mxu0 0.0
  %309 = vmatpush1.msra.mxu0 0.0
  %310 = vmatprep.subr.mxu0 0.0
  %311 = vmatpush1.msra.mxu0 0.0
  %312 = vmatprep.subr.mxu0 0.0
  %313 = vmatpush1.msra.mxu0 0.0
  %314 = vmatprep.subr.mxu0 0.0
  %315 = vmatpush1.msra.mxu0 0.0
  %316 = vmatprep.subr.mxu0 0.0
  %317 = vmatpush1.msra.mxu0 0.0
  %318 = vmatprep.subr.mxu0 0.0
  %319 = vmatpush1.msra.mxu0 0.0
  %320 = vmatprep.subr.mxu0 0.0
  %321 = vmatpush1.msra.mxu0 0.0
  %322 = vmatprep.subr.mxu0 0.0
  %323 = vmatpush1.msra.mxu0 0.0
  %324 = vmatprep.subr.mxu0 0.0
  %325 = vmatpush1.msra.mxu0 0.0
  %326 = vmatprep.subr.mxu0 0.0
  %327 = vmatpush1.msra.mxu0 0.0
  %328 = vmatprep.subr.mxu0 0.0
  %329 = vmatpush1.msra.mxu0 0.0
  %330 = vmatprep.subr.mxu0 0.0
  %331 = vmatpush1.msra.mxu0 0.0
  %332 = vmatprep.subr.mxu0 0.0
  %333 = vmatpush1.msra.mxu0 0.0
  %334 = vmatprep.subr.mxu0 0.0
  %335 = vmatpush1.msra.mxu0 0.0
  %336 = vmatprep.subr.mxu0 0.0
  %337 = vmatpush1.msra.mxu0 0.0
  %338 = vmatprep.subr.mxu0 0.0
  %339 = vmatpush1.msra.mxu0 0.0
  %340 = vmatprep.subr.mxu0 0.0
  %341 = vmatpush1.msra.mxu0 0.0
  %342 = vmatprep.mubr.f32.mxu0 0.0
  %343 = vmatmul.mubr.f32.gmra.mrb[0].mxu0 %v276
  %v344 = vpop.f32.mrb[0].mxu0
  %v345 = vadd.f32 %v273, %v344
  %v346 = vpop.f32.mrb[0].mxu0
  %347 = vdwg.mxu0
  %vm348 = vcmask 31744
  %349 = vst.msk [vmem:[%s9] sm:$0xff] %vm348, %v345
  // Predicated region
  $region38: #{simple_nn_forward.1} parent=0 // pred_check
    _
  $region39: #{simple_nn_forward.1} parent=0 // pred_check_branch
    %351 = sbr.rel (0) target = $region41
  $region40: #{simple_nn_forward.1} parent=0 // pred_region
    _
  $region41: #{simple_nn_forward.1} parent=0 // pred_fallthru
    _
  // Predicated region
  $region42: #{simple_nn_forward.1} parent=0 // pred_check
    _
  $region43: #{simple_nn_forward.1} parent=0 // pred_check_branch
    %353 = sbr.rel (0) target = $region45
  $region44: #{simple_nn_forward.1} parent=0 // pred_region
    _
  $region45: #{simple_nn_forward.1} parent=0 // pred_fallthru
    _

</llo_original>
